<compile_context>
chip_gen: v7x
topology: tpu7x:2x2x1
jax: 0.10.0
libtpu: 0.0.40
codegen_flags: <defaults>
</compile_context>

<pallas_src>
import functools

import jax
import jax.numpy as jnp
from jax import lax
from jax.experimental import pallas as pl
from jax.experimental.pallas import tpu as pltpu

_NEG_BIG = -1e30  # finite "-inf" for masking padded logits


def _ce_temp_kernel(anchor_ref, cand_ref, loss_ref, m_ref, l_ref, tgt_ref, *,
                    inv_temperature, num_rows, num_cols, block_rows,
                    block_cols):
    i = pl.program_id(0)   # batch tile (parallel)
    j = pl.program_id(1)   # candidate tile (reduction axis, innermost)

    @pl.when(j == 0)
    def _init():
        m_ref[...] = jnp.full_like(m_ref, _NEG_BIG)
        l_ref[...] = jnp.zeros_like(l_ref)

    # Fold 1/T into the (small) anchor tile; keep native dtype for the MXU.
    a = anchor_ref[...] * inv_temperature                 # [tb, D]
    c = cand_ref[...]                                     # [tc, D]
    # A @ B^T without an explicit transpose: contract both feature dims.
    s = lax.dot_general(a, c,
                        dimension_numbers=(((1,), (1,)), ((), ())),
                        preferred_element_type=jnp.float32)   # [tb, tc] f32

    # Mask padded candidate columns so they don't leak into the softmax.
    col = j * block_cols + lax.broadcasted_iota(jnp.int32, s.shape, 1)
    s = jnp.where(col < num_cols, s, _NEG_BIG)

    # Target logit (label == 0) is column 0 of the first candidate tile.
    @pl.when(j == 0)
    def _grab_target():
        tgt_ref[...] = s[:, 0:1]

    # Online logsumexp over the streamed candidate tiles.
    m_prev = m_ref[...]
    m_new = jnp.maximum(m_prev, jnp.max(s, axis=1, keepdims=True))
    alpha = jnp.exp(m_prev - m_new)
    l_ref[...] = alpha * l_ref[...] + jnp.sum(jnp.exp(s - m_new), axis=1,
                                              keepdims=True)
    m_ref[...] = m_new

    @pl.when(j == pl.num_programs(1) - 1)
    def _finalize():
        lse = m_ref[...] + jnp.log(l_ref[...])
        loss = lse - tgt_ref[...]                          # [tb, 1]
        row = i * block_rows + lax.broadcasted_iota(jnp.int32, loss.shape, 0)
        loss_ref[...] = jnp.where(row < num_rows, loss, 0.0)


def _round_up(x, m):
    return (x + m - 1) // m * m


def cross_entropy_loss_with_temperature(anchor, positive, negatives,
                                        temperature=1.0):
    """Pallas-backed equivalent of CrossEntropyLossWithTemperature.forward."""
    B, D = anchor.shape
    num_negatives = int(negatives.shape[0])

    # Fuse the two matmuls: one lane-dense candidate matrix, target at col 0.
    cands = jnp.concatenate([positive, negatives], axis=0)   # [C, D]
    C = cands.shape[0]

    # Tile sizes: batch parallel (megacore on v7x), candidates streamed.
    tb = min(128, _round_up(B, 8))
    tc = min(512, _round_up(C, 128))
    B_pad = _round_up(B, tb)
    C_pad = _round_up(C, tc)
    if B_pad != B:
        anchor = jnp.pad(anchor, ((0, B_pad - B), (0, 0)))
    if C_pad != C:
        cands = jnp.pad(cands, ((0, C_pad - C), (0, 0)))

    kernel = functools.partial(
        _ce_temp_kernel,
        inv_temperature=1.0 / float(temperature),
        num_rows=B, num_cols=C, block_rows=tb, block_cols=tc)

    per_row_loss = pl.pallas_call(
        kernel,
        out_shape=jax.ShapeDtypeStruct((B_pad, 1), jnp.float32),
        grid_spec=pltpu.PrefetchScalarGridSpec(
            num_scalar_prefetch=0,
            grid=(B_pad // tb, C_pad // tc),
            in_specs=[
                pl.BlockSpec((tb, D), lambda i, j: (i, 0)),   # anchor
                pl.BlockSpec((tc, D), lambda i, j: (j, 0)),   # candidates
            ],
            out_specs=pl.BlockSpec((tb, 1), lambda i, j: (i, 0)),
            scratch_shapes=[
                pltpu.VMEM((tb, 1), jnp.float32),   # running max
                pltpu.VMEM((tb, 1), jnp.float32),   # running sum-exp
                pltpu.VMEM((tb, 1), jnp.float32),   # target logit
            ]),
        compiler_params=pltpu.CompilerParams(
            dimension_semantics=("parallel", "arbitrary"),
            vmem_limit_bytes=32 * 1024 * 1024),
    )(anchor, cands)

    # mean(loss / max_loss) == sum(loss) * (1 / (B * max_loss))
    max_loss = jnp.log(jnp.float32(1.0 + num_negatives))
    return jnp.sum(per_row_loss) * (1.0 / (B * max_loss))


def _reference(anchor, positive, negatives, temperature):
    logits = jnp.concatenate(
        [anchor @ positive.T, anchor @ negatives.T], axis=1) / temperature
    lse = jax.scipy.special.logsumexp(logits, axis=1)
    loss = lse - logits[:, 0]
    max_loss = jnp.log(1.0 + negatives.shape[0])
    return jnp.mean(loss / max_loss)


if __name__ == "__main__":
    key = jax.random.PRNGKey(0)
    ka, kp, kn = jax.random.split(key, 3)

    B, D, P, N = 8, 32, 8, 16          # batch, hidden, #positive rows, #negatives
    temperature = 0.5

    anchor = jax.random.normal(ka, (B, D), dtype=jnp.float32)
    positive = jax.random.normal(kp, (P, D), dtype=jnp.float32)
    negatives = jax.random.normal(kn, (N, D), dtype=jnp.float32)

    loss = cross_entropy_loss_with_temperature(
        anchor, positive, negatives, temperature)
    loss = jax.block_until_ready(loss)

    ref = _reference(anchor, positive, negatives, temperature)
    assert jnp.allclose(loss, ref, atol=1e-5, rtol=1e-5), (loss, ref)

    print("KERNEL_OK")
</pallas_src>

<mosaic_0001>
module attributes {stable_mosaic.version = 11 : i64} {
  func.func @_ce_temp_kernel(%arg0: i32, %arg1: i32, %arg2: memref<8x32xf32, #tpu.memory_space<vmem>>, %arg3: memref<128x32xf32, #tpu.memory_space<vmem>>, %arg4: memref<8x1xf32, #tpu.memory_space<vmem>>, %arg5: memref<8x1xf32, #tpu.memory_space<vmem>>, %arg6: memref<8x1xf32, #tpu.memory_space<vmem>>, %arg7: memref<8x1xf32, #tpu.memory_space<vmem>>) attributes {dimension_semantics = [#tpu.dimension_semantics<parallel>, #tpu.dimension_semantics<arbitrary>], iteration_bounds = array<i64: 1, 1>, scalar_prefetch = 0 : i64, scratch_operands = 3 : i64, tpu.core_type = #tpu.core_type<tc>, window_params = [{transform_indices = @transform_0, window_bounds = array<i64: 8, 32>}, {transform_indices = @transform_1, window_bounds = array<i64: 128, 32>}, {transform_indices = @transform_2, window_bounds = array<i64: 8, 1>}]} {
    %c0_i32 = arith.constant 0 : i32
    %0 = arith.cmpi eq, %arg1, %c0_i32 : i32
    %1 = arith.extui %0 : i1 to i32
    %c0_i32_0 = arith.constant 0 : i32
    %2 = arith.cmpi ne, %1, %c0_i32_0 : i32
    scf.if %2 {
      %cst_20 = arith.constant -1.000000e+30 : f32
      %38 = vector.broadcast %cst_20 : f32 to vector<8x1xf32>
      %c0_21 = arith.constant 0 : index
      %c0_22 = arith.constant 0 : index
      %39 = vector.load %arg5[%c0_21, %c0_22] : memref<8x1xf32, #tpu.memory_space<vmem>>, vector<8x1xf32>
      tpu.vector_store %arg5[%c0_21, %c0_22], %38 {strides = array<i32>} : memref<8x1xf32, #tpu.memory_space<vmem>>, vector<8x1xf32>,
      %cst_23 = arith.constant 0.000000e+00 : f32
      %40 = vector.broadcast %cst_23 : f32 to vector<8x1xf32>
      %c0_24 = arith.constant 0 : index
      %c0_25 = arith.constant 0 : index
      %41 = vector.load %arg6[%c0_24, %c0_25] : memref<8x1xf32, #tpu.memory_space<vmem>>, vector<8x1xf32>
      tpu.vector_store %arg6[%c0_24, %c0_25], %40 {strides = array<i32>} : memref<8x1xf32, #tpu.memory_space<vmem>>, vector<8x1xf32>,
    } else {
    }
    %c0 = arith.constant 0 : index
    %c0_1 = arith.constant 0 : index
    %3 = vector.load %arg2[%c0, %c0_1] : memref<8x32xf32, #tpu.memory_space<vmem>>, vector<8x32xf32>
    %cst = arith.constant 2.000000e+00 : f32
    %4 = vector.broadcast %cst : f32 to vector<8x32xf32>
    %5 = arith.mulf %3, %4 : vector<8x32xf32>
    %c0_2 = arith.constant 0 : index
    %c0_3 = arith.constant 0 : index
    %6 = vector.load %arg3[%c0_2, %c0_3] : memref<128x32xf32, #tpu.memory_space<vmem>>, vector<128x32xf32>
    %cst_4 = arith.constant dense<0.000000e+00> : vector<8x128xf32>
    %7 = tpu.matmul %5, %6, %cst_4 {dimension_numbers = #tpu.dot_dimension_numbers<[1], [1], [0], [0], [0, 0, 1, 0], [], []>} : vector<8x32xf32>, vector<128x32xf32>, vector<8x128xf32> -> vector<8x128xf32>
    %c128_i32 = arith.constant 128 : i32
    %8 = arith.muli %arg1, %c128_i32 : i32
    %9 = tpu.iota {dimensions = array<i32: 1>} : vector<8x128xi32>
    %10 = vector.broadcast %8 : i32 to vector<8x128xi32>
    %11 = arith.addi %10, %9 : vector<8x128xi32>
    %c24_i32 = arith.constant 24 : i32
    %12 = vector.broadcast %c24_i32 : i32 to vector<8x128xi32>
    %13 = arith.cmpi slt, %11, %12 : vector<8x128xi32>
    %cst_5 = arith.constant -1.000000e+30 : f32
    %14 = vector.broadcast %cst_5 : f32 to vector<8x128xf32>
    %15 = arith.select %13, %7, %14 : vector<8x128xi1>, vector<8x128xf32>
    %c0_i32_6 = arith.constant 0 : i32
    %16 = arith.cmpi eq, %arg1, %c0_i32_6 : i32
    %17 = arith.extui %16 : i1 to i32
    %c0_i32_7 = arith.constant 0 : i32
    %18 = arith.cmpi ne, %17, %c0_i32_7 : i32
    scf.if %18 {
      %38 = vector.extract_strided_slice %15 {offsets = [0, 0], sizes = [8, 1], strides = [1, 1]} : vector<8x128xf32> to vector<8x1xf32>
      %c0_20 = arith.constant 0 : index
      %c0_21 = arith.constant 0 : index
      %39 = vector.load %arg7[%c0_20, %c0_21] : memref<8x1xf32, #tpu.memory_space<vmem>>, vector<8x1xf32>
      tpu.vector_store %arg7[%c0_20, %c0_21], %38 {strides = array<i32>} : memref<8x1xf32, #tpu.memory_space<vmem>>, vector<8x1xf32>,
    } else {
    }
    %c0_8 = arith.constant 0 : index
    %c0_9 = arith.constant 0 : index
    %19 = vector.load %arg5[%c0_8, %c0_9] : memref<8x1xf32, #tpu.memory_space<vmem>>, vector<8x1xf32>
    %cst_10 = arith.constant dense<0xFF800000> : vector<8xf32>
    %20 = vector.multi_reduction <maximumf>, %15, %cst_10 [1] : vector<8x128xf32> to vector<8xf32>
    %21 = vector.shape_cast %20 : vector<8xf32> to vector<8x1xf32>
    %22 = arith.maximumf %19, %21 : vector<8x1xf32>
    %23 = arith.subf %19, %22 : vector<8x1xf32>
    %24 = math.exp %23 : vector<8x1xf32>
    %c0_11 = arith.constant 0 : index
    %c0_12 = arith.constant 0 : index
    %25 = vector.load %arg6[%c0_11, %c0_12] : memref<8x1xf32, #tpu.memory_space<vmem>>, vector<8x1xf32>
    %26 = arith.mulf %24, %25 : vector<8x1xf32>
    %27 = vector.broadcast %22 : vector<8x1xf32> to vector<8x128xf32>
    %28 = arith.subf %15, %27 : vector<8x128xf32>
    %29 = math.exp %28 : vector<8x128xf32>
    %cst_13 = arith.constant dense<0.000000e+00> : vector<8xf32>
    %30 = vector.multi_reduction <add>, %29, %cst_13 [1] : vector<8x128xf32> to vector<8xf32>
    %31 = vector.shape_cast %30 : vector<8xf32> to vector<8x1xf32>
    %32 = arith.addf %26, %31 : vector<8x1xf32>
    %c0_14 = arith.constant 0 : index
    %c0_15 = arith.constant 0 : index
    %33 = vector.load %arg6[%c0_14, %c0_15] : memref<8x1xf32, #tpu.memory_space<vmem>>, vector<8x1xf32>
    tpu.vector_store %arg6[%c0_14, %c0_15], %32 {strides = array<i32>} : memref<8x1xf32, #tpu.memory_space<vmem>>, vector<8x1xf32>,
    %c0_16 = arith.constant 0 : index
    %c0_17 = arith.constant 0 : index
    %34 = vector.load %arg5[%c0_16, %c0_17] : memref<8x1xf32, #tpu.memory_space<vmem>>, vector<8x1xf32>
    tpu.vector_store %arg5[%c0_16, %c0_17], %22 {strides = array<i32>} : memref<8x1xf32, #tpu.memory_space<vmem>>, vector<8x1xf32>,
    %c0_i32_18 = arith.constant 0 : i32
    %35 = arith.cmpi eq, %arg1, %c0_i32_18 : i32
    %36 = arith.extui %35 : i1 to i32
    %c0_i32_19 = arith.constant 0 : i32
    %37 = arith.cmpi ne, %36, %c0_i32_19 : i32
    scf.if %37 {
      %c0_20 = arith.constant 0 : index
      %c0_21 = arith.constant 0 : index
      %38 = vector.load %arg5[%c0_20, %c0_21] : memref<8x1xf32, #tpu.memory_space<vmem>>, vector<8x1xf32>
      %c0_22 = arith.constant 0 : index
      %c0_23 = arith.constant 0 : index
      %39 = vector.load %arg6[%c0_22, %c0_23] : memref<8x1xf32, #tpu.memory_space<vmem>>, vector<8x1xf32>
      %40 = math.log %39 : vector<8x1xf32>
      %41 = arith.addf %38, %40 : vector<8x1xf32>
      %c0_24 = arith.constant 0 : index
      %c0_25 = arith.constant 0 : index
      %42 = vector.load %arg7[%c0_24, %c0_25] : memref<8x1xf32, #tpu.memory_space<vmem>>, vector<8x1xf32>
      %43 = arith.subf %41, %42 : vector<8x1xf32>
      %c8_i32 = arith.constant 8 : i32
      %44 = arith.muli %arg0, %c8_i32 : i32
      %45 = tpu.iota {dimensions = array<i32: 0>} : vector<8x1xi32>
      %46 = vector.broadcast %44 : i32 to vector<8x1xi32>
      %47 = arith.addi %46, %45 : vector<8x1xi32>
      %c8_i32_26 = arith.constant 8 : i32
      %48 = vector.broadcast %c8_i32_26 : i32 to vector<8x1xi32>
      %49 = arith.cmpi slt, %47, %48 : vector<8x1xi32>
      %cst_27 = arith.constant 0.000000e+00 : f32
      %50 = vector.broadcast %cst_27 : f32 to vector<8x1xf32>
      %51 = arith.select %49, %43, %50 : vector<8x1xi1>, vector<8x1xf32>
      %c0_28 = arith.constant 0 : index
      %c0_29 = arith.constant 0 : index
      %52 = vector.load %arg4[%c0_28, %c0_29] : memref<8x1xf32, #tpu.memory_space<vmem>>, vector<8x1xf32>
      tpu.vector_store %arg4[%c0_28, %c0_29], %51 {strides = array<i32>} : memref<8x1xf32, #tpu.memory_space<vmem>>, vector<8x1xf32>,
    } else {
    }
    return
  }
  func.func @transform_0(%arg0: i32, %arg1: i32) -> (i32, i32) {
    %c0_i32 = arith.constant 0 : i32
    %c0_i32_0 = arith.constant 0 : i32
    return %arg0, %c0_i32 : i32, i32
  }
  func.func @transform_1(%arg0: i32, %arg1: i32) -> (i32, i32) {
    %c0_i32 = arith.constant 0 : i32
    %c0_i32_0 = arith.constant 0 : i32
    return %arg1, %c0_i32 : i32, i32
  }
  func.func @transform_2(%arg0: i32, %arg1: i32) -> (i32, i32) {
    %c0_i32 = arith.constant 0 : i32
    %c0_i32_0 = arith.constant 0 : i32
    return %arg0, %c0_i32 : i32, i32
  }
}

</mosaic_0001>

<llo_original>
// kernel: tpu_custom_call.1
$region0: #{tpu_custom_call.1}
  #allocation0 [shape = 'u32[]', space=smem, size = 0x4, offset = 0x4, fixed_abs, tag = 'smem constant byte address 0x4 - core index']
  #allocation1 [shape = 'u32[144,128]{1,0:T(1,128)}', space=vmem, size = 0x12000, scoped, tag = 'internal scratch']
  #allocation2 [shape = 'f32[8,1]{1,0:T(8,128)}', space=vmem, size = 0x1000, scoped, tag = 'scratch operand']
  #allocation3 [shape = 'f32[8,1]{1,0:T(8,128)}', space=vmem, size = 0x1000, scoped, tag = 'scratch operand']
  #allocation4 [shape = 'f32[8,1]{1,0:T(8,128)}', space=vmem, size = 0x1000, scoped, tag = 'scratch operand']
  %s0 = inlined_call_operand.vmem [shape: f32[8,32], index: 0, kind: input, shape index: {}]
  %s1 = inlined_call_operand.vmem [shape: f32[128,32], index: 1, kind: input, shape index: {}]
  %s2 = inlined_call_operand.vmem [shape: f32[8,1], index: 2, kind: output, shape index: {}]
  %s3 = sld [smem:[#allocation0]]
  $region30: #{tpu_custom_call.1} parent=0
    _
  %s5 = ssub.s32 1, %s3
  %s6 = scalar_select 0, %s5, %s3
  // Predicated region
  $region2: #{tpu_custom_call.1} parent=0 // pred_check
    _
  $region3: #{tpu_custom_call.1} parent=0 // pred_check_branch
    %8 = sbr.rel (0) target = $region5
  $region4: #{tpu_custom_call.1} parent=0 // pred_region
    _
  $region5: #{tpu_custom_call.1} parent=0 // pred_fallthru
    _
  // Predicated region
  $region6: #{tpu_custom_call.1} parent=0 // pred_check
    _
  $region7: #{tpu_custom_call.1} parent=0 // pred_check_branch
    %10 = sbr.rel (0) target = $region9
  $region8: #{tpu_custom_call.1} parent=0 // pred_region
    _
  $region9: #{tpu_custom_call.1} parent=0 // pred_fallthru
    _
  %p11 = scmp.eq.s32.totalorder 0, 0
  // Predicated region
  $region10: #{tpu_custom_call.1} parent=0 // pred_check
    %p12 = pneg %p11
  $region11: #{tpu_custom_call.1} parent=0 // pred_check_branch
    %14 = sbr.rel (%p12) target = $region13
  $region12: #{tpu_custom_call.1} parent=0 // pred_region
    %vm15 = vcmask 7168
    %16 = vst.msk [vmem:[#allocation2] sm:$0xff] %vm15, -1e+30
    %17 = vst.msk [vmem:[#allocation3] sm:$0xff] %vm15, 0.0
  $region13: #{tpu_custom_call.1} parent=0 // pred_fallthru
    _
  %v18 = vld [vmem:[%s0] sm:$0xff]
  %v19 = vmul.f32 %v18, 2.0
  %v20 = vld [vmem:[%s1] sm:$0xff]
  %v21 = vld [vmem:[%s1 + $0x8] sm:$0xff]
  %v22 = vld [vmem:[%s1 + $0x10] sm:$0xff]
  %v23 = vld [vmem:[%s1 + $0x18] sm:$0xff]
  %v24 = vld [vmem:[%s1 + $0x20] sm:$0xff]
  %v25 = vld [vmem:[%s1 + $0x28] sm:$0xff]
  %v26 = vld [vmem:[%s1 + $0x30] sm:$0xff]
  %v27 = vld [vmem:[%s1 + $0x38] sm:$0xff]
  %v28 = vld [vmem:[%s1 + $0x40] sm:$0xff]
  %v29 = vld [vmem:[%s1 + $0x48] sm:$0xff]
  %v30 = vld [vmem:[%s1 + $0x50] sm:$0xff]
  %v31 = vld [vmem:[%s1 + $0x58] sm:$0xff]
  %v32 = vld [vmem:[%s1 + $0x60] sm:$0xff]
  %v33 = vld [vmem:[%s1 + $0x68] sm:$0xff]
  %v34 = vld [vmem:[%s1 + $0x70] sm:$0xff]
  %v35 = vld [vmem:[%s1 + $0x78] sm:$0xff]
  %vm36 = vcmask 261120
  %v38 = vsel %vm36, %v19, 0
  %v41 = vsel %vm36, %v20, 0
  %v44 = vsel %vm36, %v21, 0
  %v47 = vsel %vm36, %v22, 0
  %v50 = vsel %vm36, %v23, 0
  %v53 = vsel %vm36, %v24, 0
  %v56 = vsel %vm36, %v25, 0
  %v59 = vsel %vm36, %v26, 0
  %v62 = vsel %vm36, %v27, 0
  %v65 = vsel %vm36, %v28, 0
  %v68 = vsel %vm36, %v29, 0
  %v71 = vsel %vm36, %v30, 0
  %v74 = vsel %vm36, %v31, 0
  %v77 = vsel %vm36, %v32, 0
  %v80 = vsel %vm36, %v33, 0
  %v83 = vsel %vm36, %v34, 0
  %v86 = vsel %vm36, %v35, 0
  %88 = vmatprep.subr.mxu0 0.0
  %89 = vmatpush1.xpose.msra.mxu0 %v41
  %90 = vmatprep.subr.mxu0 0.0
  %91 = vmatpush1.xpose.msra.mxu0 %v44
  %92 = vmatprep.subr.mxu0 0.0
  %93 = vmatpush1.xpose.msra.mxu0 %v47
  %94 = vmatprep.subr.mxu0 0.0
  %95 = vmatpush1.xpose.msra.mxu0 %v50
  %96 = vmatprep.subr.mxu0 0.0
  %97 = vmatpush1.xpose.msra.mxu0 %v53
  %98 = vmatprep.subr.mxu0 0.0
  %99 = vmatpush1.xpose.msra.mxu0 %v56
  %100 = vmatprep.subr.mxu0 0.0
  %101 = vmatpush1.xpose.msra.mxu0 %v59
  %102 = vmatprep.subr.mxu0 0.0
  %103 = vmatpush1.xpose.msra.mxu0 %v62
  %104 = vmatprep.subr.mxu0 0.0
  %105 = vmatpush1.xpose.msra.mxu0 %v65
  %106 = vmatprep.subr.mxu0 0.0
  %107 = vmatpush1.xpose.msra.mxu0 %v68
  %108 = vmatprep.subr.mxu0 0.0
  %109 = vmatpush1.xpose.msra.mxu0 %v71
  %110 = vmatprep.subr.mxu0 0.0
  %111 = vmatpush1.xpose.msra.mxu0 %v74
  %112 = vmatprep.subr.mxu0 0.0
  %113 = vmatpush1.xpose.msra.mxu0 %v77
  %114 = vmatprep.subr.mxu0 0.0
  %115 = vmatpush1.xpose.msra.mxu0 %v80
  %116 = vmatprep.subr.mxu0 0.0
  %117 = vmatpush1.xpose.msra.mxu0 %v83
  %118 = vmatprep.subr.mxu0 0.0
  %119 = vmatpush1.xpose.msra.mxu0 %v86
  %120 = vmatprep.subr.mxu0 0.0
  %121 = vmatpush1.xpose.msra.mxu0 0.0
  %122 = vmatprep.subr.mxu0 0.0
  %123 = vmatpush1.xpose.msra.mxu0 0.0
  %124 = vmatprep.subr.mxu0 0.0
  %125 = vmatpush1.xpose.msra.mxu0 0.0
  %126 = vmatprep.subr.mxu0 0.0
  %127 = vmatpush1.xpose.msra.mxu0 0.0
  %128 = vmatprep.subr.mxu0 0.0
  %129 = vmatpush1.xpose.msra.mxu0 0.0
  %130 = vmatprep.subr.mxu0 0.0
  %131 = vmatpush1.xpose.msra.mxu0 0.0
  %132 = vmatprep.subr.mxu0 0.0
  %133 = vmatpush1.xpose.msra.mxu0 0.0
  %134 = vmatprep.subr.mxu0 0.0
  %135 = vmatpush1.xpose.msra.mxu0 0.0
  %136 = vmatprep.subr.mxu0 0.0
  %137 = vmatpush1.xpose.msra.mxu0 0.0
  %138 = vmatprep.subr.mxu0 0.0
  %139 = vmatpush1.xpose.msra.mxu0 0.0
  %140 = vmatprep.subr.mxu0 0.0
  %141 = vmatpush1.xpose.msra.mxu0 0.0
  %142 = vmatprep.subr.mxu0 0.0
  %143 = vmatpush1.xpose.msra.mxu0 0.0
  %144 = vmatprep.subr.mxu0 0.0
  %145 = vmatpush1.xpose.msra.mxu0 0.0
  %146 = vmatprep.subr.mxu0 0.0
  %147 = vmatpush1.xpose.msra.mxu0 0.0
  %148 = vmatprep.subr.mxu0 0.0
  %149 = vmatpush1.xpose.msra.mxu0 0.0
  %150 = vmatprep.subr.mxu0 0.0
  %151 = vmatpush1.xpose.msra.mxu0 0.0
  %152 = vmatprep.mubr.f32.mxu0 0.0
  %153 = vmatmul.mubr.f32.gmra.mrb[0].mxu0 %v38
  %v154 = vpop.f32.mrb[0].mxu0
  %v155 = vadd.f32 0.0, %v154
  %v156 = vpop.f32.mrb[0].mxu0
  %157 = vdwg.mxu0
  %s158 = smul.u32 0, 128
  %v159 = vlaneseq
  %v160 = vand.u32 %v159, 127
  %v161 = vstv %s158
  %v162 = vadd.s32 %v161, %v160
  %vm163 = vcmp.lt.s32.totalorder %v162, 24
  %v164 = vsel %vm163, %v155, -1e+30
  // Predicated region
  $region14: #{tpu_custom_call.1} parent=0 // pred_check
    %p165 = pneg %p11
  $region15: #{tpu_custom_call.1} parent=0 // pred_check_branch
    %167 = sbr.rel (%p165) target = $region17
  $region16: #{tpu_custom_call.1} parent=0 // pred_region
    %vm168 = vcmask 7168
    %169 = vst.msk [vmem:[#allocation4] sm:$0xff] %vm168, %v164
  $region17: #{tpu_custom_call.1} parent=0 // pred_fallthru
    _
  %v170 = vld [vmem:[#allocation2] sm:$0xff]
  %171 = vmax.xlane.f32.xlu0 %v164
  %v172 = vpop.xlane.xlu0 %171
  %v173 = vmax.f32 %v170, %v172
  %v174 = vsub.f32 %v170, %v173
  %v175 = vmul.f32 %v174, 1.442695
  %v176 = vpow.pop %v175
  %v177 = vld [vmem:[#allocation3] sm:$0xff]
  %v178 = vmul.f32 %v176, %v177
  %180 = vset.pattern.permute.xlu0 0
  %181 = vperm.xlu0 %180, %v173
  %v182 = vpop.permute.xlu0 %181
  %v184 = vsub.f32 %v164, %v182
  %v185 = vmul.f32 %v184, 1.442695
  %v186 = vpow.pop %v185
  %187 = vadd.xlane.f32.xlu0 %v186
  %v188 = vpop.xlane.xlu0 %187
  %v189 = vadd.f32 %v178, %v188
  %vm190 = vcmask 7168
  %191 = vst.msk [vmem:[#allocation3] sm:$0xff] %vm190, %v189
  %192 = vst.msk [vmem:[#allocation2] sm:$0xff] %vm190, %v173
  // Predicated region
  $region18: #{tpu_custom_call.1} parent=0 // pred_check
    %p193 = pneg %p11
  $region19: #{tpu_custom_call.1} parent=0 // pred_check_branch
    %195 = sbr.rel (%p193) target = $region21
  $region20: #{tpu_custom_call.1} parent=0 // pred_region
    %v196 = vld [vmem:[#allocation2] sm:$0xff]
    %v197 = vld [vmem:[#allocation3] sm:$0xff]
    %v198 = vlog2.pop %v197
    %v199 = vmul.f32 %v198, 0.6931472
    %v200 = vadd.f32 %v196, %v199
    %v201 = vld [vmem:[#allocation4] sm:$0xff]
    %v202 = vsub.f32 %v200, %v201
    %s203 = smul.u32 0, 8
    %v204 = vlaneseq
    %v205 = vshrl.u32 %v204, 7
    %v206 = vstv %s203
    %v207 = vadd.s32 %v206, %v205
    %vm208 = vcmp.lt.s32.totalorder %v207, 8
    %v209 = vsel %vm208, %v202, 0.0
    %210 = vst.msk [vmem:[%s2] sm:$0xff] %vm190, %v209
  $region21: #{tpu_custom_call.1} parent=0 // pred_fallthru
    _
  // Predicated region
  $region22: #{tpu_custom_call.1} parent=0 // pred_check
    _
  $region23: #{tpu_custom_call.1} parent=0 // pred_check_branch
    %212 = sbr.rel (0) target = $region25
  $region24: #{tpu_custom_call.1} parent=0 // pred_region
    _
  $region25: #{tpu_custom_call.1} parent=0 // pred_fallthru
    _
  // Predicated region
  $region26: #{tpu_custom_call.1} parent=0 // pred_check
    _
  $region27: #{tpu_custom_call.1} parent=0 // pred_check_branch
    %214 = sbr.rel (0) target = $region29
  $region28: #{tpu_custom_call.1} parent=0 // pred_region
    _
  $region29: #{tpu_custom_call.1} parent=0 // pred_fallthru
    _

</llo_original>
